<compile_context>
chip_gen: v5e
topology: v5e:2x2
jax: 0.10.0
libtpu: 0.0.40
codegen_flags: <defaults>
</compile_context>

<pallas_src>
import math

import jax
import jax.numpy as jnp
from jax import lax
from jax.experimental import pallas as pl
from jax.experimental.pallas import tpu as pltpu

_LANE = 128


def _pooler_kernel(x_ref, wt_ref, b_ref, o_ref):
    # x_ref : [B, H]   CLS tokens (native dtype)
    # wt_ref: [H, TN]  pre-transposed weight tile ([in, out] layout -> no transpose)
    # b_ref : [1, TN]  bias tile
    # o_ref : [B, TN]  output tile
    y = jnp.dot(x_ref[...], wt_ref[...], preferred_element_type=jnp.float32)
    y = y + b_ref[...].astype(jnp.float32)
    # Exact (erf-based) GELU, matching torch.nn.GELU / ACT2FN["gelu"].
    g = 0.5 * y * (1.0 + lax.erf(y * (1.0 / math.sqrt(2.0))))
    o_ref[...] = g.astype(o_ref.dtype)


def prepare_context_pooler_params(weight, bias, *, param_dtype=None):
    """One-time (init-time) parameter prep.

    Transposes the torch-layout [out_features, in_features] weight to [in, out]
    so the kernel's matmul is a plain MXU contraction (no in-kernel transpose),
    and optionally casts params to a narrower dtype (e.g. bf16) since this
    kernel is entirely weight-bandwidth bound.
    """
    w_t = jnp.asarray(weight).T
    b = jnp.asarray(bias)
    if param_dtype is not None:
        w_t = w_t.astype(param_dtype)
        b = b.astype(param_dtype)
    return w_t, b


def _num_tensorcores():
    """Best-effort count of TensorCores per chip (dual-TC: v7x, v4/v5p megacore)."""
    try:
        kind = jax.devices()[0].device_kind.lower()
    except Exception:  # pragma: no cover - defensive
        return 1
    for tag in ("v7", "v5p", "v4"):
        if tag in kind:
            return 2
    return 1


def _choose_num_tiles(H, weight_itemsize, n_cores):
    """Number of weight column-tiles (grid length).

    Prefer the fewest tiles (1 on single-TC chips) whose double-buffered weight
    tile fits a conservative VMEM budget; on dual-TC chips keep the tile count a
    multiple of the core count so the two cores get balanced, disjoint tiles.
    tn = H // num_tiles must divide H and be lane-dense (multiple of 128) or H.
    """
    max_weight_tile_bytes = 20 * 1024 * 1024  # double-buffered weight tile budget
    n = max(1, n_cores)
    limit = max(n_cores, pl.cdiv(H, _LANE))
    while n <= limit:
        if H % n == 0:
            tn = H // n
            if (tn % _LANE == 0 or tn == H) and 2 * tn * H * weight_itemsize <= max_weight_tile_bytes:
                return n
        n += max(1, n_cores)
    return 1  # tiny / odd H: one full-width tile always fits at pooler sizes


def _vmem_limit_bytes(B, H, tn, x_itemsize, w_itemsize, out_itemsize):
    """Size the scoped-VMEM limit from the actual (double-buffered) tile footprint."""
    need = (
        2 * tn * H * w_itemsize      # weight tile, double-buffered
        + 2 * B * H * x_itemsize     # resident x block (+ spare buffer)
        + 2 * tn * 4                 # bias tile (<= f32)
        + 2 * B * tn * max(out_itemsize, 4)  # output tile + f32 intermediates
    )
    need = int(need * 1.5) + (1 << 20)  # 50% slack + 1 MiB compiler scratch
    # Floor at 16 MiB; cap at 48 MiB so v7x (64 MiB physical) keeps >=25% headroom.
    return max(16 * 1024 * 1024, min(need, 48 * 1024 * 1024))


def context_pooler_forward(hidden_states, weight_t, bias, *, num_weight_tiles=None):
    """ContextPooler forward (eval mode).

    hidden_states: [B, S, H]
    weight_t     : [H, H] pre-transposed ([in, out]) weight from
                   prepare_context_pooler_params (torch stores [out, in]).
    bias         : [H]
    """
    B, S, H = hidden_states.shape
    assert weight_t.shape == (H, H), "weight_t must be the [in, out] pre-transposed weight"
    assert bias.shape == (H,)

    # CLS token slice — the only wrapper-side op (tiny B*H copy; fuses upstream under jit).
    x = hidden_states[:, 0, :]  # [B, H]
    # TODO(synk): training-mode StableDropout (mask + 1/(1-p) rescale) not implemented; eval is identity.

    n_cores = _num_tensorcores()
    w_itemsize = jnp.dtype(weight_t.dtype).itemsize
    if num_weight_tiles is None:
        num_weight_tiles = _choose_num_tiles(H, w_itemsize, n_cores)
    assert H % num_weight_tiles == 0, "tile width must divide H exactly"
    tn = H // num_weight_tiles

    b2 = bias.reshape(1, H)
    vmem_limit = _vmem_limit_bytes(
        B, H, tn,
        jnp.dtype(x.dtype).itemsize, w_itemsize, jnp.dtype(hidden_states.dtype).itemsize,
    )

    out = pl.pallas_call(
        _pooler_kernel,
        out_shape=jax.ShapeDtypeStruct((B, H), hidden_states.dtype),
        grid_spec=pltpu.PrefetchScalarGridSpec(
            num_scalar_prefetch=0,
            grid=(num_weight_tiles,),
            in_specs=[
                # x: constant block index -> fetched once, no re-DMA across tiles.
                pl.BlockSpec((B, H), lambda j: (0, 0)),
                # Pre-transposed weight column tile [H, tn] (plain MXU feed).
                pl.BlockSpec((H, tn), lambda j: (0, j)),
                # Bias tile.
                pl.BlockSpec((1, tn), lambda j: (0, j)),
            ],
            out_specs=pl.BlockSpec((B, tn), lambda j: (0, j)),
        ),
        compiler_params=pltpu.CompilerParams(
            # Independent output column tiles: shard across TensorCores on dual-TC chips.
            dimension_semantics=("parallel",),
            vmem_limit_bytes=vmem_limit,
        ),
    )(x, weight_t, b2)

    return out


def _reference(hidden_states, weight, bias):
    """Pure-JAX reference with the torch-layout [out, in] weight."""
    x = hidden_states[:, 0, :].astype(jnp.float32)
    y = x @ weight.T.astype(jnp.float32) + bias.astype(jnp.float32)
    return 0.5 * y * (1.0 + lax.erf(y / jnp.sqrt(2.0)))


if __name__ == "__main__":
    B, S, H = 2, 8, 32  # pooler_hidden_size = 32

    key = jax.random.PRNGKey(0)
    k_x, k_w, k_b = jax.random.split(key, 3)
    hidden_states = jax.random.normal(k_x, (B, S, H), dtype=jnp.float32)
    # Deterministic "Linear(pooler_hidden_size, pooler_hidden_size)" params (torch layout).
    weight = jax.random.normal(k_w, (H, H), dtype=jnp.float32) * (1.0 / math.sqrt(H))
    bias = jax.random.normal(k_b, (H,), dtype=jnp.float32) * 0.01

    # One-time init-side prep (transpose to [in, out]); no per-call transpose.
    w_t, b = prepare_context_pooler_params(weight, bias)

    # f32 run vs f32 reference.
    out = jax.block_until_ready(context_pooler_forward(hidden_states, w_t, b))
    ref = _reference(hidden_states, weight, bias)
    assert out.shape == (B, H)
    assert jnp.allclose(out, ref, atol=1e-4, rtol=1e-4), "f32 mismatch vs reference"

    # bf16 parameter path (halves weight HBM traffic; f32 MXU accumulation), loose tolerance.
    w_t16, b16 = prepare_context_pooler_params(weight, bias, param_dtype=jnp.bfloat16)
    out_bf16 = jax.block_until_ready(
        context_pooler_forward(hidden_states.astype(jnp.bfloat16), w_t16, b16)
    )
    assert out_bf16.shape == (B, H)
    assert jnp.allclose(out_bf16.astype(jnp.float32), ref, atol=1e-1, rtol=1e-1), \
        "bf16 mismatch vs reference"

    print("KERNEL_OK")
</pallas_src>

<mosaic_0001>
module attributes {stable_mosaic.version = 11 : i64} {
  func.func @_pooler_kernel(%arg0: i32, %arg1: memref<2x32xf32, #tpu.memory_space<vmem>>, %arg2: memref<32x32xf32, #tpu.memory_space<vmem>>, %arg3: memref<1x32xf32, #tpu.memory_space<vmem>>, %arg4: memref<2x32xf32, #tpu.memory_space<vmem>>) attributes {dimension_semantics = [#tpu.dimension_semantics<parallel>], iteration_bounds = array<i64: 1>, scalar_prefetch = 0 : i64, scratch_operands = 0 : i64, tpu.core_type = #tpu.core_type<tc>, window_params = [{pipeline_mode = #tpu.pipeline_mode<synchronous>, transform_indices = @transform_0, window_bounds = array<i64: 2, 32>}, {transform_indices = @transform_1, window_bounds = array<i64: 32, 32>}, {transform_indices = @transform_2, window_bounds = array<i64: 1, 32>}, {transform_indices = @transform_3, window_bounds = array<i64: 2, 32>}]} {
    %c0 = arith.constant 0 : index
    %c0_0 = arith.constant 0 : index
    %0 = vector.load %arg1[%c0, %c0_0] : memref<2x32xf32, #tpu.memory_space<vmem>>, vector<2x32xf32>
    %c0_1 = arith.constant 0 : index
    %c0_2 = arith.constant 0 : index
    %1 = vector.load %arg2[%c0_1, %c0_2] : memref<32x32xf32, #tpu.memory_space<vmem>>, vector<32x32xf32>
    %cst = arith.constant dense<0.000000e+00> : vector<2x32xf32>
    %2 = tpu.matmul %0, %1, %cst {dimension_numbers = #tpu.dot_dimension_numbers<[1], [0], [0], [1], [0, 0, 1, 1], [], []>} : vector<2x32xf32>, vector<32x32xf32>, vector<2x32xf32> -> vector<2x32xf32>
    %c0_3 = arith.constant 0 : index
    %c0_4 = arith.constant 0 : index
    %3 = vector.load %arg3[%c0_3, %c0_4] : memref<1x32xf32, #tpu.memory_space<vmem>>, vector<1x32xf32>
    %4 = vector.broadcast %3 : vector<1x32xf32> to vector<2x32xf32>
    %5 = arith.addf %2, %4 : vector<2x32xf32>
    %cst_5 = arith.constant 5.000000e-01 : f32
    %6 = vector.broadcast %cst_5 : f32 to vector<2x32xf32>
    %7 = arith.mulf %6, %5 : vector<2x32xf32>
    %cst_6 = arith.constant 0.707106769 : f32
    %8 = vector.broadcast %cst_6 : f32 to vector<2x32xf32>
    %9 = arith.mulf %5, %8 : vector<2x32xf32>
    %10 = math.erf %9 : vector<2x32xf32>
    %cst_7 = arith.constant 1.000000e+00 : f32
    %11 = vector.broadcast %cst_7 : f32 to vector<2x32xf32>
    %12 = arith.addf %11, %10 : vector<2x32xf32>
    %13 = arith.mulf %7, %12 : vector<2x32xf32>
    %c0_8 = arith.constant 0 : index
    %c0_9 = arith.constant 0 : index
    %14 = vector.load %arg4[%c0_8, %c0_9] : memref<2x32xf32, #tpu.memory_space<vmem>>, vector<2x32xf32>
    tpu.vector_store %arg4[%c0_8, %c0_9], %13 {strides = array<i32>} : memref<2x32xf32, #tpu.memory_space<vmem>>, vector<2x32xf32>,
    return
  }
  func.func @transform_0(%arg0: i32) -> (i32, i32) {
    %c0_i32 = arith.constant 0 : i32
    %c0_i32_0 = arith.constant 0 : i32
    %c0_i32_1 = arith.constant 0 : i32
    return %c0_i32, %c0_i32_0 : i32, i32
  }
  func.func @transform_1(%arg0: i32) -> (i32, i32) {
    %c0_i32 = arith.constant 0 : i32
    %c0_i32_0 = arith.constant 0 : i32
    return %c0_i32, %arg0 : i32, i32
  }
  func.func @transform_2(%arg0: i32) -> (i32, i32) {
    %c0_i32 = arith.constant 0 : i32
    %c0_i32_0 = arith.constant 0 : i32
    return %c0_i32, %arg0 : i32, i32
  }
  func.func @transform_3(%arg0: i32) -> (i32, i32) {
    %c0_i32 = arith.constant 0 : i32
    %c0_i32_0 = arith.constant 0 : i32
    return %c0_i32, %arg0 : i32, i32
  }
}

</mosaic_0001>

<llo_original>
// kernel: tpu_custom_call.1
$region0: #{tpu_custom_call.1}
  #allocation0 [shape = 'u32[]', space=smem, size = 0x4, offset = 0x4, fixed_abs, tag = 'smem constant byte address 0x4 - core index']
  #allocation1 [shape = 'u32[72,128]{1,0:T(1,128)}', space=vmem, size = 0x9000, scoped, tag = 'internal scratch']
  %s0 = inlined_call_operand.hbm [shape: f32[2,32], index: 0, kind: input, shape index: {}]
  %s1 = inlined_call_operand.hbm [shape: f32[32,32], index: 1, kind: input, shape index: {}]
  %s2 = inlined_call_operand.vmem [shape: f32[1,32], index: 2, kind: input, shape index: {}]
  %s3 = inlined_call_operand.hbm [shape: f32[2,32], index: 3, kind: output, shape index: {}]
  %s4 = sld [smem:[#allocation0]]
  $region30: #{tpu_custom_call.1} parent=0
    _
  %s6 = ssub.s32 1, %s4
  %s7 = scalar_select 0, %s6, %s4
  $region1: #{tpu_custom_call.1} parent=0
    #allocation2 [shape = 'u8[1024]{0}', space=vmem, size = 0x400, scoped, tag = 'input window, operand 0, single buffered']
    #allocation3 [shape = 's32[1]{0}', space=sflag, size = 0x4, scoped, tag = 'scoped memory for tpu_custom_call.1']
    #allocation4 [shape = 's32[1]{0}', space=sflag, size = 0x4, scoped, tag = 'scoped memory for tpu_custom_call.1']
    #allocation5 [shape = 'u8[16384]{0}', space=vmem, size = 0x4000, scoped, tag = 'input window, operand 1, single buffered']
    #allocation6 [shape = 's32[1]{0}', space=sflag, size = 0x4, scoped, tag = 'scoped memory for tpu_custom_call.1']
    #allocation7 [shape = 'u8[1024]{0}', space=vmem, size = 0x400, scoped, tag = 'output window, operand 0, single buffered']
    %8 = vsyncpa [#allocation3], 0
    %9 = vsyncpa [#allocation6], 0
    %10 = vsyncpa [#allocation4], 0
    // Predicated region
    $region2: #{tpu_custom_call.1} parent=1 // pred_check
      _
    $region3: #{tpu_custom_call.1} parent=1 // pred_check_branch
      %12 = sbr.rel (0) target = $region5
    $region4: #{tpu_custom_call.1} parent=1 // pred_region
      %14 = vsyncadd [#allocation3], 0
      %s16 = sshll.u32 %s0, 4
      %s17 = int_to_ptr.hbm [resolvable:$true] %s16
      %s18 = sshll.u32 [#allocation2], 4
      %s19 = int_to_ptr.vmem [resolvable:$true] %s18
      %21 = dma.hbm_to_vmem [thread:$0]  %s17, 32, %s19, [#allocation3]
    $region5: #{tpu_custom_call.1} parent=1 // pred_fallthru
      _
    // Predicated region
    $region6: #{tpu_custom_call.1} parent=1 // pred_check
      _
    $region7: #{tpu_custom_call.1} parent=1 // pred_check_branch
      %23 = sbr.rel (0) target = $region9
    $region8: #{tpu_custom_call.1} parent=1 // pred_region
      %25 = vsyncadd [#allocation6], 0
      %s26 = sshll.u32 %s1, 4
      %s27 = int_to_ptr.hbm [resolvable:$true] %s26
      %s28 = sshll.u32 [#allocation5], 4
      %s29 = int_to_ptr.vmem [resolvable:$true] %s28
      %34 = dma.hbm_to_vmem [thread:$0]  %s27, 512, %s29, [#allocation6], 128, 128, 8
    $region9: #{tpu_custom_call.1} parent=1 // pred_fallthru
      _
    // Predicated region
    $region10: #{tpu_custom_call.1} parent=1 // pred_check
      _
    $region11: #{tpu_custom_call.1} parent=1 // pred_check_branch
      %36 = sbr.rel (0) target = $region13
    $region12: #{tpu_custom_call.1} parent=1 // pred_region
      _
    $region13: #{tpu_custom_call.1} parent=1 // pred_fallthru
      _
    // Predicated region
    $region14: #{tpu_custom_call.1} parent=1 // pred_check
      _
    $region15: #{tpu_custom_call.1} parent=1 // pred_check_branch
      %38 = sbr.rel (0) target = $region17
    $region16: #{tpu_custom_call.1} parent=1 // pred_region
      %40 = dma.done [#allocation3], 32
    $region17: #{tpu_custom_call.1} parent=1 // pred_fallthru
      _
    // Predicated region
    $region18: #{tpu_custom_call.1} parent=1 // pred_check
      _
    $region19: #{tpu_custom_call.1} parent=1 // pred_check_branch
      %42 = sbr.rel (0) target = $region21
    $region20: #{tpu_custom_call.1} parent=1 // pred_region
      %44 = dma.done [#allocation6], 512
    $region21: #{tpu_custom_call.1} parent=1 // pred_fallthru
      _
    %v45 = vld [vmem:[#allocation2] sm:$0x3]
    %v46 = vld [vmem:[#allocation5] sm:$0xff]
    %v47 = vld [vmem:[#allocation5 + $0x8] sm:$0xff]
    %v48 = vld [vmem:[#allocation5 + $0x10] sm:$0xff]
    %v49 = vld [vmem:[#allocation5 + $0x18] sm:$0xff]
    %v50 = vld [vmem:[%s2] sm:$0x1]
    %v52 = vperm.slane %v50, 0
    %vm54 = vcmask 261120
    %v56 = vsel %vm54, %v45, 0
    %58 = vmatpush.msra.mxu0 0.0
    %59 = vmatpush.msra.mxu0 0.0
    %60 = vmatpush.msra.mxu0 0.0
    %61 = vmatpush.msra.mxu0 0.0
    %62 = vmatpush.msra.mxu0 0.0
    %63 = vmatpush.msra.mxu0 0.0
    %64 = vmatpush.msra.mxu0 0.0
    %65 = vmatpush.msra.mxu0 0.0
    %66 = vmatpush.msra.mxu0 0.0
    %67 = vmatpush.msra.mxu0 0.0
    %68 = vmatpush.msra.mxu0 0.0
    %69 = vmatpush.msra.mxu0 0.0
    %70 = vmatpush.msra.mxu0 %v49
    %71 = vmatpush.msra.mxu0 %v48
    %72 = vmatpush.msra.mxu0 %v47
    %73 = vmatpush.msra.mxu0 %v46
    %74 = vmatmul.f32.gmra.mxu0 %v56
    %v75 = vpop.f32.mrf.mxu0
    %v76 = vadd.f32 %v52, %v75
    %77 = vdwg.mxu0
    %v78 = vmul.f32 %v76, 0.5
    %v79 = vmul.f32 %v76, 0.70710677
    %v80 = vmul.f32 %v79, %v79
    %v81 = vmin.f32 16.0, %v80
    %v82 = vmul.f32 %v81, 2.1237322e-06
    %v83 = vadd.f32 %v82, 0.00028619796
    %v84 = vmul.f32 %v81, %v83
    %v85 = vadd.f32 %v84, 0.0036580483
    %v86 = vmul.f32 %v81, %v85
    %v87 = vadd.f32 %v86, 0.05243302
    %v88 = vmul.f32 %v81, %v87
    %v89 = vadd.f32 %v88, 0.18741608
    %v90 = vmul.f32 %v81, %v89
    %v91 = vadd.f32 %v90, 1.1283791
    %v92 = vmul.f32 %v79, %v91
    %v93 = vmul.f32 %v81, 3.8918573e-05
    %v94 = vadd.f32 %v93, 0.001143296
    %v95 = vmul.f32 %v81, %v94
    %v96 = vadd.f32 %v95, 0.014752088
    %v97 = vmul.f32 %v81, %v96
    %v98 = vadd.f32 %v97, 0.112945676
    %v99 = vmul.f32 %v81, %v98
    %v100 = vadd.f32 %v99, 0.4994258
    %v101 = vmul.f32 %v81, %v100
    %v102 = vadd.f32 %v101, 1.0
    %v103 = vrcp.pop %v102
    %v104 = vmul.f32 %v102, %v103
    %v105 = vsub.f32 1.0, %v104
    %v106 = vmul.f32 %v103, %v105
    %v107 = vadd.f32 %v103, %v106
    %vm108 = vweird.f32 %v102
    %vm109 = vweird.f32 %v103
    %vm110 = vmor %vm108, %vm109
    %v111 = vsel %vm110, %v103, %v107
    %v112 = vand.u32 2147483647, %v102
    %vm113 = vcmp.eq.f32.partialorder %v112, 8.507059e+37
    %v114 = vand.u32 %v102, 2147483648
    %v115 = vor.u32 1.1754944e-38, %v114
    %v116 = vsel %vm113, %v115, %v111
    %v117 = vmul.f32 %v92, %v116
    %v118 = vmin.f32 %v117, 1.0
    %v119 = vmax.f32 %v118, -1.0
    %v120 = vadd.f32 %v119, 1.0
    %v121 = vmul.f32 %v78, %v120
    %vm122 = vcmask 254976
    %123 = vst.msk [vmem:[#allocation7] sm:$0x3] %vm122, %v121
    // Predicated region
    $region22: #{tpu_custom_call.1} parent=1 // pred_check
      _
    $region23: #{tpu_custom_call.1} parent=1 // pred_check_branch
      %125 = sbr.rel (0) target = $region25
    $region24: #{tpu_custom_call.1} parent=1 // pred_region
      %127 = vsyncadd [#allocation4], 0
      %s129 = sshll.u32 [#allocation7], 4
      %s130 = int_to_ptr.vmem [resolvable:$true] %s129
      %s131 = sshll.u32 %s3, 4
      %s132 = int_to_ptr.hbm [resolvable:$true] %s131
      %134 = dma.vmem_to_hbm [thread:$0]  %s130, 32, %s132, [#allocation4]
    $region25: #{tpu_custom_call.1} parent=1 // pred_fallthru
      _
    // Predicated region
    $region26: #{tpu_custom_call.1} parent=1 // pred_check
      _
    $region27: #{tpu_custom_call.1} parent=1 // pred_check_branch
      %136 = sbr.rel (0) target = $region29
    $region28: #{tpu_custom_call.1} parent=1 // pred_region
      %138 = dma.done [#allocation4], 32
    $region29: #{tpu_custom_call.1} parent=1 // pred_fallthru
      _
    %139 = vsyncpa [#allocation3], 1
    %140 = vsyncpa [#allocation6], 1
    %141 = vsyncpa [#allocation4], 1

</llo_original>
